<compile_context>
chip_gen: v7x
topology: tpu7x:2x2x1
jax: 0.10.0
libtpu: 0.0.40
codegen_flags: <defaults>
</compile_context>

<pallas_src>
import jax
import jax.numpy as jnp
from jax.experimental import pallas as pl
from jax.experimental.pallas import tpu as pltpu


def _round_up(x, m):
    return ((x + m - 1) // m) * m


def _make_controller_kernel(n_inputs):
    """Kernel over refs: (x_0..x_{n-1}, w_t, b, out)."""

    def kernel(*refs):
        x_refs = refs[:n_inputs]
        wt_ref = refs[n_inputs]          # (actions, latents)  == W^T
        b_ref = refs[n_inputs + 1]       # (actions, 1)
        o_ref = refs[n_inputs + 2]       # (actions, tb) -- batch on lane axis

        # Fused concat: build x^T = (latents, tb) with batch on the lane axis.
        # Per-input transposes go through the XLU (separate issue slot);
        # sublane-axis concatenation at multiple-of-8 offsets is layout-cheap.
        if n_inputs == 1:
            x_t = x_refs[0][...].T
        else:
            x_t = jnp.concatenate([r[...].T for r in x_refs], axis=0)

        # One MXU matmul over the full K = latents (f32 accumulation):
        #   (actions, latents) @ (latents, tb) -> (actions, tb)
        logits = jnp.dot(wt_ref[...], x_t, preferred_element_type=jnp.float32)
        logits = logits + b_ref[...]                  # (A, TB) + (A, 1)

        # Numerically stable softmax over the action axis (axis 0).  All ops
        # are lane-dense over the batch.  Exact division so every output
        # column sums to 1 up to f32 rounding.
        m = jnp.max(logits, axis=0, keepdims=True)    # (1, TB)
        e = jnp.exp(logits - m)
        s = jnp.sum(e, axis=0, keepdims=True)         # (1, TB)
        o_ref[...] = (e / s).astype(o_ref.dtype)

    return kernel


def controller_forward(params, *inputs, block_b=2048):
    """softmax(cat(inputs, dim=1) @ W + b, axis=1).

    params = (W: (latents, actions), b: (1, actions)).  The concat is fused
    into the kernel; the kernel works in the transposed (actions, batch)
    layout so softmax + store are lane-dense, and the tiny result is
    transposed back to (batch, actions) here.
    """
    w, b = params
    latents, actions = w.shape
    batch = inputs[0].shape[0]
    n = len(inputs)
    feats = [int(x.shape[1]) for x in inputs]
    assert sum(feats) == latents, "input feature widths must sum to `latents`"

    # Tiny W-sized wrapper ops: W passed once (as W^T), bias as a column.
    wt = jnp.asarray(w, jnp.float32).T                # (actions, latents)
    b_col = jnp.asarray(b, jnp.float32).reshape(actions, 1)

    # Batch tiling.  Small batches: a single block (grid=(1,)).  Large
    # batches: big tiles (amortize ~0.35us/step overhead), capped so the grid
    # stays >= 2 steps for v7x's two TensorCores; tb is a multiple of 128 so
    # the output's lane dim satisfies the (8,128) block constraint.
    if batch <= 512:
        tb = batch
    else:
        tb = min(block_b, _round_up(pl.cdiv(batch, 2), 128))
    grid = (pl.cdiv(batch, tb),)

    in_specs = [pl.BlockSpec((tb, f), lambda i: (i, 0)) for f in feats]
    in_specs.append(pl.BlockSpec((actions, latents), lambda i: (0, 0)))  # W^T
    in_specs.append(pl.BlockSpec((actions, 1), lambda i: (0, 0)))        # bias
    out_spec = pl.BlockSpec((actions, tb), lambda i: (0, i))

    bytes_accessed = (
        sum(x.size * x.dtype.itemsize for x in inputs)
        + wt.size * 4 + b_col.size * 4
        + batch * actions * 4
    )
    cost = pl.CostEstimate(
        flops=2 * batch * latents * actions + 6 * batch * actions,
        transcendentals=batch * actions,              # the exp
        bytes_accessed=bytes_accessed,
    )

    # NOTE: for very small batches (grid=(1,)) a plain XLA concat->matmul->
    # softmax can beat a standalone pallas_call (launch/DMA-setup overhead
    # dwarfs the FLOPs); kept on the Pallas path so the kernel is exercised.
    out_t = pl.pallas_call(
        _make_controller_kernel(n),
        out_shape=jax.ShapeDtypeStruct((actions, batch), jnp.float32),
        grid=grid,
        in_specs=in_specs,
        out_specs=out_spec,
        compiler_params=pltpu.CompilerParams(
            dimension_semantics=("parallel",)),
        cost_estimate=cost,
    )(*inputs, wt, b_col)

    return out_t.T                                    # (batch, actions)


def init_controller_params(key, latents, actions):
    # nn.Linear default init: U(-1/sqrt(fan_in), 1/sqrt(fan_in)).
    kw, kb = jax.random.split(key)
    bound = 1.0 / (latents ** 0.5)
    w = jax.random.uniform(kw, (latents, actions), jnp.float32, -bound, bound)
    b = jax.random.uniform(kb, (1, actions), jnp.float32, -bound, bound)
    return w, b


def _reference(params, *inputs):
    x = jnp.concatenate(inputs, axis=1)
    return jax.nn.softmax(x @ params[0] + params[1], axis=1)


if __name__ == "__main__":
    key = jax.random.PRNGKey(0)
    k_params, k_x1, k_x2, k_y1, k_y2 = jax.random.split(key, 5)

    batch = 4
    latents = 32          # total concatenated feature dim (16 + 16)
    actions = 8

    x1 = jax.random.normal(k_x1, (batch, 16), jnp.float32)
    x2 = jax.random.normal(k_x2, (batch, 16), jnp.float32)
    params = init_controller_params(k_params, latents, actions)

    out = controller_forward(params, x1, x2)
    out = jax.block_until_ready(out)

    ref = _reference(params, x1, x2)
    assert out.shape == (batch, actions)
    assert jnp.allclose(out, ref, atol=1e-3, rtol=1e-3)
    # Exact division in the kernel -> rows sum to 1 up to f32 rounding.
    assert jnp.allclose(jnp.sum(out, axis=1), 1.0, atol=1e-4)

    # Exercise the multi-step parallel batch grid as well (tb=512, grid=(2,)).
    big_batch = 1024
    y1 = jax.random.normal(k_y1, (big_batch, 16), jnp.float32)
    y2 = jax.random.normal(k_y2, (big_batch, 16), jnp.float32)
    out_big = jax.block_until_ready(controller_forward(params, y1, y2))
    ref_big = _reference(params, y1, y2)
    assert out_big.shape == (big_batch, actions)
    assert jnp.allclose(out_big, ref_big, atol=1e-3, rtol=1e-3)
    assert jnp.allclose(jnp.sum(out_big, axis=1), 1.0, atol=1e-4)

    print("KERNEL_OK")
</pallas_src>

<mosaic_0001>
module attributes {stable_mosaic.version = 11 : i64} {
  func.func @kernel(%arg0: i32, %arg1: memref<4x16xf32, #tpu.memory_space<vmem>>, %arg2: memref<4x16xf32, #tpu.memory_space<vmem>>, %arg3: memref<8x32xf32, #tpu.memory_space<vmem>>, %arg4: memref<8x1xf32, #tpu.memory_space<vmem>>, %arg5: memref<8x4xf32, #tpu.memory_space<vmem>>) attributes {dimension_semantics = [#tpu.dimension_semantics<parallel>], iteration_bounds = array<i64: 1>, scalar_prefetch = 0 : i64, scratch_operands = 0 : i64, tpu.core_type = #tpu.core_type<tc>, window_params = [{transform_indices = @transform_0, window_bounds = array<i64: 4, 16>}, {transform_indices = @transform_1, window_bounds = array<i64: 4, 16>}, {pipeline_mode = #tpu.pipeline_mode<synchronous>, transform_indices = @transform_2, window_bounds = array<i64: 8, 32>}, {pipeline_mode = #tpu.pipeline_mode<synchronous>, transform_indices = @transform_3, window_bounds = array<i64: 8, 1>}, {transform_indices = @transform_4, window_bounds = array<i64: 8, 4>}]} {
    %c0 = arith.constant 0 : index
    %c0_0 = arith.constant 0 : index
    %0 = vector.load %arg1[%c0, %c0_0] : memref<4x16xf32, #tpu.memory_space<vmem>>, vector<4x16xf32>
    %1 = tpu.transpose %0, [1, 0] : vector<4x16xf32> -> vector<16x4xf32>
    %c0_1 = arith.constant 0 : index
    %c0_2 = arith.constant 0 : index
    %2 = vector.load %arg2[%c0_1, %c0_2] : memref<4x16xf32, #tpu.memory_space<vmem>>, vector<4x16xf32>
    %3 = tpu.transpose %2, [1, 0] : vector<4x16xf32> -> vector<16x4xf32>
    %4 = tpu.concatenate %1, %3 in 0 : vector<16x4xf32>, vector<16x4xf32> -> vector<32x4xf32>
    %c0_3 = arith.constant 0 : index
    %c0_4 = arith.constant 0 : index
    %5 = vector.load %arg3[%c0_3, %c0_4] : memref<8x32xf32, #tpu.memory_space<vmem>>, vector<8x32xf32>
    %cst = arith.constant dense<0.000000e+00> : vector<8x4xf32>
    %6 = tpu.matmul %5, %4, %cst {dimension_numbers = #tpu.dot_dimension_numbers<[1], [0], [0], [1], [0, 0, 1, 1], [], []>} : vector<8x32xf32>, vector<32x4xf32>, vector<8x4xf32> -> vector<8x4xf32>
    %c0_5 = arith.constant 0 : index
    %c0_6 = arith.constant 0 : index
    %7 = vector.load %arg4[%c0_5, %c0_6] : memref<8x1xf32, #tpu.memory_space<vmem>>, vector<8x1xf32>
    %8 = vector.broadcast %7 : vector<8x1xf32> to vector<8x4xf32>
    %9 = arith.addf %6, %8 : vector<8x4xf32>
    %cst_7 = arith.constant dense<0xFF800000> : vector<4xf32>
    %10 = vector.multi_reduction <maximumf>, %9, %cst_7 [0] : vector<8x4xf32> to vector<4xf32>
    %11 = vector.shape_cast %10 : vector<4xf32> to vector<1x4xf32>
    %12 = vector.broadcast %11 : vector<1x4xf32> to vector<8x4xf32>
    %13 = arith.subf %9, %12 : vector<8x4xf32>
    %14 = math.exp %13 : vector<8x4xf32>
    %cst_8 = arith.constant dense<0.000000e+00> : vector<4xf32>
    %15 = vector.multi_reduction <add>, %14, %cst_8 [0] : vector<8x4xf32> to vector<4xf32>
    %16 = vector.shape_cast %15 : vector<4xf32> to vector<1x4xf32>
    %17 = vector.broadcast %16 : vector<1x4xf32> to vector<8x4xf32>
    %18 = arith.divf %14, %17 : vector<8x4xf32>
    %c0_9 = arith.constant 0 : index
    %c0_10 = arith.constant 0 : index
    %19 = vector.load %arg5[%c0_9, %c0_10] : memref<8x4xf32, #tpu.memory_space<vmem>>, vector<8x4xf32>
    tpu.vector_store %arg5[%c0_9, %c0_10], %18 {strides = array<i32>} : memref<8x4xf32, #tpu.memory_space<vmem>>, vector<8x4xf32>,
    return
  }
  func.func @transform_0(%arg0: i32) -> (i32, i32) {
    %c0_i32 = arith.constant 0 : i32
    %c0_i32_0 = arith.constant 0 : i32
    return %arg0, %c0_i32 : i32, i32
  }
  func.func @transform_1(%arg0: i32) -> (i32, i32) {
    %c0_i32 = arith.constant 0 : i32
    %c0_i32_0 = arith.constant 0 : i32
    return %arg0, %c0_i32 : i32, i32
  }
  func.func @transform_2(%arg0: i32) -> (i32, i32) {
    %c0_i32 = arith.constant 0 : i32
    %c0_i32_0 = arith.constant 0 : i32
    %c0_i32_1 = arith.constant 0 : i32
    return %c0_i32, %c0_i32_0 : i32, i32
  }
  func.func @transform_3(%arg0: i32) -> (i32, i32) {
    %c0_i32 = arith.constant 0 : i32
    %c0_i32_0 = arith.constant 0 : i32
    %c0_i32_1 = arith.constant 0 : i32
    return %c0_i32, %c0_i32_0 : i32, i32
  }
  func.func @transform_4(%arg0: i32) -> (i32, i32) {
    %c0_i32 = arith.constant 0 : i32
    %c0_i32_0 = arith.constant 0 : i32
    return %c0_i32, %arg0 : i32, i32
  }
}

</mosaic_0001>

<llo_original>
// kernel: tpu_custom_call.1
$region0: #{tpu_custom_call.1}
  #allocation0 [shape = 'u32[]', space=smem, size = 0x4, offset = 0x4, fixed_abs, tag = 'smem constant byte address 0x4 - core index']
  #allocation1 [shape = 'u32[144,128]{1,0:T(1,128)}', space=vmem, size = 0x12000, scoped, tag = 'internal scratch']
  %s0 = inlined_call_operand.vmem [shape: f32[4,16], index: 0, kind: input, shape index: {}]
  %s1 = inlined_call_operand.vmem [shape: f32[4,16], index: 1, kind: input, shape index: {}]
  %s2 = inlined_call_operand.vmem [shape: f32[8,32], index: 2, kind: input, shape index: {}]
  %s3 = inlined_call_operand.vmem [shape: f32[8,1], index: 3, kind: input, shape index: {}]
  %s4 = inlined_call_operand.vmem [shape: f32[8,4], index: 4, kind: output, shape index: {}]
  %s5 = sld [smem:[#allocation0]]
  $region26: #{tpu_custom_call.1} parent=0
    _
  %s7 = ssub.s32 1, %s5
  %s8 = scalar_select 0, %s7, %s5
  // Predicated region
  $region2: #{tpu_custom_call.1} parent=0 // pred_check
    _
  $region3: #{tpu_custom_call.1} parent=0 // pred_check_branch
    %10 = sbr.rel (0) target = $region5
  $region4: #{tpu_custom_call.1} parent=0 // pred_region
    _
  $region5: #{tpu_custom_call.1} parent=0 // pred_fallthru
    _
  // Predicated region
  $region6: #{tpu_custom_call.1} parent=0 // pred_check
    _
  $region7: #{tpu_custom_call.1} parent=0 // pred_check_branch
    %12 = sbr.rel (0) target = $region9
  $region8: #{tpu_custom_call.1} parent=0 // pred_region
    _
  $region9: #{tpu_custom_call.1} parent=0 // pred_fallthru
    _
  // Predicated region
  $region10: #{tpu_custom_call.1} parent=0 // pred_check
    _
  $region11: #{tpu_custom_call.1} parent=0 // pred_check_branch
    %14 = sbr.rel (0) target = $region13
  $region12: #{tpu_custom_call.1} parent=0 // pred_region
    _
  $region13: #{tpu_custom_call.1} parent=0 // pred_fallthru
    _
  // Predicated region
  $region14: #{tpu_custom_call.1} parent=0 // pred_check
    _
  $region15: #{tpu_custom_call.1} parent=0 // pred_check_branch
    %16 = sbr.rel (0) target = $region17
  $region16: #{tpu_custom_call.1} parent=0 // pred_region
    _
  $region17: #{tpu_custom_call.1} parent=0 // pred_fallthru
    _
  %v17 = vld [vmem:[%s0] sm:$0xf]
  %18 = vxpose.xlu0.b32.start [1/16] %v17, 128
  %19 = vxpose.xlu0.b32.cont [2/16] 0.0, 128
  %20 = vxpose.xlu0.b32.cont [3/16] 0.0, 128
  %21 = vxpose.xlu0.b32.cont [4/16] 0.0, 128
  %22 = vxpose.xlu0.b32.cont [5/16] 0.0, 128
  %23 = vxpose.xlu0.b32.cont [6/16] 0.0, 128
  %24 = vxpose.xlu0.b32.cont [7/16] 0.0, 128
  %25 = vxpose.xlu0.b32.cont [8/16] 0.0, 128
  %26 = vxpose.xlu0.b32.cont [9/16] 0.0, 128
  %27 = vxpose.xlu0.b32.cont [10/16] 0.0, 128
  %28 = vxpose.xlu0.b32.cont [11/16] 0.0, 128
  %29 = vxpose.xlu0.b32.cont [12/16] 0.0, 128
  %30 = vxpose.xlu0.b32.cont [13/16] 0.0, 128
  %31 = vxpose.xlu0.b32.cont [14/16] 0.0, 128
  %32 = vxpose.xlu0.b32.cont [15/16] 0.0, 128
  %33 = vxpose.xlu0.b32.end [16/16] 0.0, 128
  %v34 = vpop.trf.xlu0
  %v35 = vpop.trf.xlu0
  %v36 = vpop.trf.xlu0
  %v37 = vpop.trf.xlu0
  %v38 = vpop.trf.xlu0
  %v39 = vpop.trf.xlu0
  %v40 = vpop.trf.xlu0
  %v41 = vpop.trf.xlu0
  %v42 = vpop.trf.xlu0
  %v43 = vpop.trf.xlu0
  %v44 = vpop.trf.xlu0
  %v45 = vpop.trf.xlu0
  %v46 = vpop.trf.xlu0
  %v47 = vpop.trf.xlu0
  %v48 = vpop.trf.xlu0
  %v49 = vpop.trf.xlu0
  %v50 = vld [vmem:[%s1] sm:$0xf]
  %51 = vxpose.xlu0.b32.start [1/16] %v50, 128
  %52 = vxpose.xlu0.b32.cont [2/16] 0.0, 128
  %53 = vxpose.xlu0.b32.cont [3/16] 0.0, 128
  %54 = vxpose.xlu0.b32.cont [4/16] 0.0, 128
  %55 = vxpose.xlu0.b32.cont [5/16] 0.0, 128
  %56 = vxpose.xlu0.b32.cont [6/16] 0.0, 128
  %57 = vxpose.xlu0.b32.cont [7/16] 0.0, 128
  %58 = vxpose.xlu0.b32.cont [8/16] 0.0, 128
  %59 = vxpose.xlu0.b32.cont [9/16] 0.0, 128
  %60 = vxpose.xlu0.b32.cont [10/16] 0.0, 128
  %61 = vxpose.xlu0.b32.cont [11/16] 0.0, 128
  %62 = vxpose.xlu0.b32.cont [12/16] 0.0, 128
  %63 = vxpose.xlu0.b32.cont [13/16] 0.0, 128
  %64 = vxpose.xlu0.b32.cont [14/16] 0.0, 128
  %65 = vxpose.xlu0.b32.cont [15/16] 0.0, 128
  %66 = vxpose.xlu0.b32.end [16/16] 0.0, 128
  %v67 = vpop.trf.xlu0
  %v68 = vpop.trf.xlu0
  %v69 = vpop.trf.xlu0
  %v70 = vpop.trf.xlu0
  %v71 = vpop.trf.xlu0
  %v72 = vpop.trf.xlu0
  %v73 = vpop.trf.xlu0
  %v74 = vpop.trf.xlu0
  %v75 = vpop.trf.xlu0
  %v76 = vpop.trf.xlu0
  %v77 = vpop.trf.xlu0
  %v78 = vpop.trf.xlu0
  %v79 = vpop.trf.xlu0
  %v80 = vpop.trf.xlu0
  %v81 = vpop.trf.xlu0
  %v82 = vpop.trf.xlu0
  %v83 = vld [vmem:[%s2] sm:$0xff]
  %v84 = vld [vmem:[%s3] sm:$0xff]
  %86 = vset.pattern.permute.xlu0 0
  %87 = vperm.xlu0 %86, %v84
  %v88 = vpop.permute.xlu0 %87
  %vm90 = vcmask 261120
  %v92 = vsel %vm90, %v83, 0
  %94 = vmatprep.subr.mxu0 0.0
  %95 = vmatpush1.msra.mxu0 %v34
  %96 = vmatprep.subr.mxu0 0.0
  %97 = vmatpush1.msra.mxu0 %v35
  %98 = vmatprep.subr.mxu0 0.0
  %99 = vmatpush1.msra.mxu0 %v67
  %100 = vmatprep.subr.mxu0 0.0
  %101 = vmatpush1.msra.mxu0 %v68
  %102 = vmatprep.subr.mxu0 0.0
  %103 = vmatpush1.msra.mxu0 0.0
  %104 = vmatprep.subr.mxu0 0.0
  %105 = vmatpush1.msra.mxu0 0.0
  %106 = vmatprep.subr.mxu0 0.0
  %107 = vmatpush1.msra.mxu0 0.0
  %108 = vmatprep.subr.mxu0 0.0
  %109 = vmatpush1.msra.mxu0 0.0
  %110 = vmatprep.subr.mxu0 0.0
  %111 = vmatpush1.msra.mxu0 0.0
  %112 = vmatprep.subr.mxu0 0.0
  %113 = vmatpush1.msra.mxu0 0.0
  %114 = vmatprep.subr.mxu0 0.0
  %115 = vmatpush1.msra.mxu0 0.0
  %116 = vmatprep.subr.mxu0 0.0
  %117 = vmatpush1.msra.mxu0 0.0
  %118 = vmatprep.subr.mxu0 0.0
  %119 = vmatpush1.msra.mxu0 0.0
  %120 = vmatprep.subr.mxu0 0.0
  %121 = vmatpush1.msra.mxu0 0.0
  %122 = vmatprep.subr.mxu0 0.0
  %123 = vmatpush1.msra.mxu0 0.0
  %124 = vmatprep.subr.mxu0 0.0
  %125 = vmatpush1.msra.mxu0 0.0
  %126 = vmatprep.subr.mxu0 0.0
  %127 = vmatpush1.msra.mxu0 0.0
  %128 = vmatprep.subr.mxu0 0.0
  %129 = vmatpush1.msra.mxu0 0.0
  %130 = vmatprep.subr.mxu0 0.0
  %131 = vmatpush1.msra.mxu0 0.0
  %132 = vmatprep.subr.mxu0 0.0
  %133 = vmatpush1.msra.mxu0 0.0
  %134 = vmatprep.subr.mxu0 0.0
  %135 = vmatpush1.msra.mxu0 0.0
  %136 = vmatprep.subr.mxu0 0.0
  %137 = vmatpush1.msra.mxu0 0.0
  %138 = vmatprep.subr.mxu0 0.0
  %139 = vmatpush1.msra.mxu0 0.0
  %140 = vmatprep.subr.mxu0 0.0
  %141 = vmatpush1.msra.mxu0 0.0
  %142 = vmatprep.subr.mxu0 0.0
  %143 = vmatpush1.msra.mxu0 0.0
  %144 = vmatprep.subr.mxu0 0.0
  %145 = vmatpush1.msra.mxu0 0.0
  %146 = vmatprep.subr.mxu0 0.0
  %147 = vmatpush1.msra.mxu0 0.0
  %148 = vmatprep.subr.mxu0 0.0
  %149 = vmatpush1.msra.mxu0 0.0
  %150 = vmatprep.subr.mxu0 0.0
  %151 = vmatpush1.msra.mxu0 0.0
  %152 = vmatprep.subr.mxu0 0.0
  %153 = vmatpush1.msra.mxu0 0.0
  %154 = vmatprep.subr.mxu0 0.0
  %155 = vmatpush1.msra.mxu0 0.0
  %156 = vmatprep.subr.mxu0 0.0
  %157 = vmatpush1.msra.mxu0 0.0
  %158 = vmatprep.mubr.f32.mxu0 0.0
  %159 = vmatmul.mubr.f32.gmra.mrb[0].mxu0 %v92
  %v160 = vpop.f32.mrb[0].mxu0
  %v161 = vadd.f32 %v88, %v160
  %v162 = vpop.f32.mrb[0].mxu0
  %163 = vdwg.mxu0
  %vm164 = vcmask 31744
  %v165 = vsel %vm164, %v161, -inf
  %v166 = vrot.slane %v165, 4
  %v167 = vmax.f32 %v165, %v166
  %v168 = vrot.slane %v167, 2
  %v169 = vmax.f32 %v167, %v168
  %v170 = vrot.slane %v169, 1
  %v171 = vmax.f32 %v169, %v170
  %v172 = vsub.f32 %v161, %v171
  %v173 = vmul.f32 %v172, 1.442695
  %v174 = vpow.pop %v173
  %v175 = vsel %vm164, %v174, 0.0
  %v176 = vrot.slane %v175, 4
  %v177 = vadd.f32 %v175, %v176
  %v178 = vrot.slane %v177, 2
  %v179 = vadd.f32 %v177, %v178
  %v180 = vrot.slane %v179, 1
  %v181 = vadd.f32 %v179, %v180
  %v182 = vrcp.pop %v181
  %v183 = vmul.f32 %v174, %v182
  %184 = vst.msk [vmem:[%s4] sm:$0xff] %vm164, %v183
  // Predicated region
  $region18: #{tpu_custom_call.1} parent=0 // pred_check
    _
  $region19: #{tpu_custom_call.1} parent=0 // pred_check_branch
    %186 = sbr.rel (0) target = $region21
  $region20: #{tpu_custom_call.1} parent=0 // pred_region
    _
  $region21: #{tpu_custom_call.1} parent=0 // pred_fallthru
    _
  // Predicated region
  $region22: #{tpu_custom_call.1} parent=0 // pred_check
    _
  $region23: #{tpu_custom_call.1} parent=0 // pred_check_branch
    %188 = sbr.rel (0) target = $region25
  $region24: #{tpu_custom_call.1} parent=0 // pred_region
    _
  $region25: #{tpu_custom_call.1} parent=0 // pred_fallthru
    _

</llo_original>
